<compile_context>
chip_gen: v5e
topology: v5e:2x2
jax: 0.10.0
libtpu: 0.0.40
codegen_flags: <defaults>
</compile_context>

<pallas_src>
import functools

import jax
import jax.numpy as jnp
from jax.experimental import pallas as pl
from jax.experimental.pallas import tpu as pltpu


LANE = 128


def _round_up(x, m):
    return ((x + m - 1) // m) * m


# ----------------------------- Pallas kernel ---------------------------------
def _fused_mlp_kernel(*refs, num_layers, do_bn, eps, acts):
    """Whole-MLP fused forward. Gridless: one invocation, everything in VMEM.

    refs = (x_ref, w_ref_0, ..., w_ref_{L-1}, aux_ref, o_ref)
      x_ref:   [B, Fin0]            raw input (unpadded)
      w_ref_i: [Fin_i_pad, F_PAD]   pre-transposed weight, zero-padded to 128 lanes
      aux_ref: do_bn  -> [2*L, F_PAD]   rows (2i, 2i+1) = (gamma, beta) of layer i
               !do_bn -> [L, B, F_PAD]  bias pre-broadcast over the batch
      o_ref:   [B, output_size]     real output columns only (masked store)
    """
    x_ref = refs[0]
    w_refs = refs[1:1 + num_layers]
    aux_ref = refs[1 + num_layers]
    o_ref = refs[2 + num_layers]

    y = x_ref[...]
    inv_b = 1.0 / y.shape[0]                  # static: batch size is compile-time

    for i in range(num_layers):
        # Default precision passes the 1e-5 check; set precision=HIGHEST here if
        # tolerances ever tighten (irrelevant MXU cost at this size).
        y = jnp.dot(y, w_refs[i][...], preferred_element_type=jnp.float32)

        if do_bn:
            # Bias intentionally skipped: BN's mean subtraction cancels it exactly.
            gamma = aux_ref[2 * i:2 * i + 1, :]        # [1, F_PAD]
            beta = aux_ref[2 * i + 1:2 * i + 2, :]     # [1, F_PAD]
            # One-pass batch stats: independent reductions sum(y) and sum(y*y).
            mean = jnp.sum(y, axis=0, keepdims=True) * inv_b
            mean_sq = jnp.sum(y * y, axis=0, keepdims=True) * inv_b
            var = mean_sq - mean * mean                # E[y^2] - E[y]^2 (biased)
            # Row math on [1, F_PAD] only (1/B of the data):
            s = gamma * jax.lax.rsqrt(var + eps)
            shift = beta - mean * s
            # Full-tile work: exactly two VPU ops.
            y = y * s + shift
        else:
            y = y + aux_ref[i]                         # pre-broadcast [B, F_PAD] bias

        if acts[i] == "relu":
            y = jnp.maximum(y, 0.0)
        elif acts[i] == "sigmoid":
            y = jax.nn.sigmoid(y)                      # EUP exp + reciprocal path
        else:
            raise ValueError(f"unsupported activation: {acts[i]}")

    # Masked store of only the real output columns (padded lanes never leave VMEM).
    o_ref[...] = y[:, :o_ref.shape[1]].astype(o_ref.dtype)


# ------------------------ Init-time parameter packing -------------------------
def prepare_packed_params(params, input_size, batch, do_bn):
    """Pre-transpose, zero-pad to 128 lanes and pack per-layer vectors (done ONCE)."""
    feat_sizes = [w.shape[0] for (w, _, _, _) in params]     # Fout per layer
    f_pad = _round_up(max(feat_sizes + [LANE]), LANE)

    wts = []
    gb_rows = []          # used when do_bn
    bias_bcast = []       # used when not do_bn
    fin = input_size
    for i, (w, b, gamma, beta) in enumerate(params):
        fout = w.shape[0]
        fin_pad = fin if i == 0 else f_pad            # layer 0 consumes raw x (K=16)
        wt = jnp.zeros((fin_pad, f_pad), jnp.float32).at[:fin, :fout].set(w.T)
        wts.append(wt)

        if do_bn:
            # Bias dropped on purpose (cancelled by BN mean subtraction).
            gb_rows.append(jnp.ones((f_pad,), jnp.float32).at[:fout].set(gamma))
            gb_rows.append(jnp.zeros((f_pad,), jnp.float32).at[:fout].set(beta))
        else:
            bias_row = jnp.zeros((f_pad,), jnp.float32).at[:fout].set(b)
            bias_bcast.append(jnp.broadcast_to(bias_row, (batch, f_pad)))
        fin = fout

    aux = jnp.stack(gb_rows) if do_bn else jnp.stack(bias_bcast)
    return tuple(wts), aux, f_pad


def make_forward(cfg, output_size, wts, aux, batch, eps=1e-5):
    num_layers = len(wts)
    acts = tuple(cfg.activation_output if i == num_layers - 1 else cfg.activation_hidden
                 for i in range(num_layers))
    kernel = functools.partial(_fused_mlp_kernel, num_layers=num_layers,
                               do_bn=cfg.do_batch_norm, eps=eps, acts=acts)

    vmem_spec = pl.BlockSpec(memory_space=pltpu.MemorySpace.VMEM)
    fused = pl.pallas_call(
        kernel,
        # Kernel writes the real output columns directly — no wrapper slice.
        out_shape=jax.ShapeDtypeStruct((batch, output_size), jnp.float32),
        in_specs=[vmem_spec] * (1 + num_layers + 1),   # x, L weights, packed aux
        out_specs=vmem_spec,
    )

    # NOTE: do NOT add a batch-parallel grid axis while do_batch_norm=True —
    # per-tile batch statistics would silently change the results (see header).
    @jax.jit
    def forward(x):
        return fused(x, *wts, aux)

    return forward


# ----------------------------- Model wrapper ----------------------------------
class SolutionConfig:
    # Mirrors the fields of `solution` used by SolutionModel.
    layers_number = 3
    hidden_size = 32
    do_batch_norm = True
    activation_hidden = "relu"
    activation_output = "sigmoid"


def xavier_uniform(key, fan_out, fan_in, dtype=jnp.float32):
    # torch.nn.init.xavier_uniform_ on a [fan_out, fan_in] Linear weight.
    limit = (6.0 / (fan_in + fan_out)) ** 0.5
    return jax.random.uniform(key, (fan_out, fan_in), dtype=dtype,
                              minval=-limit, maxval=limit)


def init_params(key, input_size, output_size, cfg):
    params = []
    for i in range(cfg.layers_number):
        fin = input_size if i == 0 else cfg.hidden_size
        fout = cfg.hidden_size if i != cfg.layers_number - 1 else output_size
        key, wkey = jax.random.split(key)
        w = xavier_uniform(wkey, fout, fin)          # [Fout, Fin] (PyTorch layout)
        b = jnp.zeros((fout,), jnp.float32)          # bias filled with 0.0
        gamma = jnp.ones((fout,), jnp.float32)       # BatchNorm1d default weight
        beta = jnp.zeros((fout,), jnp.float32)       # BatchNorm1d default bias
        params.append((w, b, gamma, beta))
    return params


# ------------------------------- Reference ------------------------------------
def reference_forward(x, params, cfg, eps=1e-5):
    n = len(params)
    for i, (w, b, gamma, beta) in enumerate(params):
        y = x @ w.T + b
        if cfg.do_batch_norm:
            mean = jnp.mean(y, axis=0, keepdims=True)
            var = jnp.mean((y - mean) ** 2, axis=0, keepdims=True)
            y = (y - mean) / jnp.sqrt(var + eps)
            y = y * gamma + beta
        act = cfg.activation_output if i == n - 1 else cfg.activation_hidden
        y = jnp.maximum(y, 0.0) if act == "relu" else jax.nn.sigmoid(y)
        x = y
    return x


# --------------------------------- Main ----------------------------------------
if __name__ == "__main__":
    cfg = SolutionConfig()
    input_size = 16
    output_size = 1
    batch = 8

    key = jax.random.PRNGKey(0)
    key, xkey, pkey = jax.random.split(key, 3)
    x = jax.random.normal(xkey, (batch, input_size), dtype=jnp.float32)
    params = init_params(pkey, input_size, output_size, cfg)

    # One-time packing (transpose / pad / pack / pre-broadcast) — zero per-call work.
    wts, aux, f_pad = prepare_packed_params(params, input_size, batch, cfg.do_batch_norm)
    forward = make_forward(cfg, output_size, wts, aux, batch)

    out = forward(x)
    out = jax.block_until_ready(out)

    ref = reference_forward(x, params, cfg)
    assert out.shape == (batch, output_size)
    assert jnp.allclose(out, ref, atol=1e-5, rtol=1e-5), (out, ref)

    print("KERNEL_OK")
</pallas_src>

<mosaic_0001>
module attributes {stable_mosaic.version = 11 : i64} {
  func.func @_fused_mlp_kernel(%arg0: memref<8x16xf32, #tpu.memory_space<vmem>>, %arg1: memref<16x128xf32, #tpu.memory_space<vmem>>, %arg2: memref<128x128xf32, #tpu.memory_space<vmem>>, %arg3: memref<128x128xf32, #tpu.memory_space<vmem>>, %arg4: memref<6x128xf32, #tpu.memory_space<vmem>>, %arg5: memref<8x1xf32, #tpu.memory_space<vmem>>) attributes {dimension_semantics = [], scalar_prefetch = 0 : i64, scratch_operands = 0 : i64, tpu.core_type = #tpu.core_type<tc>} {
    %c0 = arith.constant 0 : index
    %c0_0 = arith.constant 0 : index
    %0 = vector.load %arg0[%c0, %c0_0] : memref<8x16xf32, #tpu.memory_space<vmem>>, vector<8x16xf32>
    %c0_1 = arith.constant 0 : index
    %c0_2 = arith.constant 0 : index
    %1 = vector.load %arg1[%c0_1, %c0_2] : memref<16x128xf32, #tpu.memory_space<vmem>>, vector<16x128xf32>
    %cst = arith.constant dense<0.000000e+00> : vector<8x128xf32>
    %2 = tpu.matmul %0, %1, %cst {dimension_numbers = #tpu.dot_dimension_numbers<[1], [0], [0], [1], [0, 0, 1, 1], [], []>} : vector<8x16xf32>, vector<16x128xf32>, vector<8x128xf32> -> vector<8x128xf32>
    %c0_3 = arith.constant 0 : index
    %c0_4 = arith.constant 0 : index
    %3 = vector.load %arg4[%c0_3, %c0_4] : memref<6x128xf32, #tpu.memory_space<vmem>>, vector<1x128xf32>
    %c1 = arith.constant 1 : index
    %c0_5 = arith.constant 0 : index
    %4 = vector.load %arg4[%c1, %c0_5] : memref<6x128xf32, #tpu.memory_space<vmem>>, vector<1x128xf32>
    %cst_6 = arith.constant dense<0.000000e+00> : vector<128xf32>
    %5 = vector.multi_reduction <add>, %2, %cst_6 [0] : vector<8x128xf32> to vector<128xf32>
    %6 = vector.shape_cast %5 : vector<128xf32> to vector<1x128xf32>
    %cst_7 = arith.constant 1.250000e-01 : f32
    %7 = vector.broadcast %cst_7 : f32 to vector<1x128xf32>
    %8 = arith.mulf %6, %7 : vector<1x128xf32>
    %9 = arith.mulf %2, %2 : vector<8x128xf32>
    %cst_8 = arith.constant dense<0.000000e+00> : vector<128xf32>
    %10 = vector.multi_reduction <add>, %9, %cst_8 [0] : vector<8x128xf32> to vector<128xf32>
    %11 = vector.shape_cast %10 : vector<128xf32> to vector<1x128xf32>
    %cst_9 = arith.constant 1.250000e-01 : f32
    %12 = vector.broadcast %cst_9 : f32 to vector<1x128xf32>
    %13 = arith.mulf %11, %12 : vector<1x128xf32>
    %14 = arith.mulf %8, %8 : vector<1x128xf32>
    %15 = arith.subf %13, %14 : vector<1x128xf32>
    %cst_10 = arith.constant 9.99999974E-6 : f32
    %16 = vector.broadcast %cst_10 : f32 to vector<1x128xf32>
    %17 = arith.addf %15, %16 : vector<1x128xf32>
    %18 = math.rsqrt %17 : vector<1x128xf32>
    %19 = arith.mulf %3, %18 : vector<1x128xf32>
    %20 = arith.mulf %8, %19 : vector<1x128xf32>
    %21 = arith.subf %4, %20 : vector<1x128xf32>
    %22 = vector.broadcast %19 : vector<1x128xf32> to vector<8x128xf32>
    %23 = arith.mulf %2, %22 : vector<8x128xf32>
    %24 = vector.broadcast %21 : vector<1x128xf32> to vector<8x128xf32>
    %25 = arith.addf %23, %24 : vector<8x128xf32>
    %cst_11 = arith.constant 0.000000e+00 : f32
    %26 = vector.broadcast %cst_11 : f32 to vector<8x128xf32>
    %27 = arith.maximumf %25, %26 : vector<8x128xf32>
    %c0_12 = arith.constant 0 : index
    %c0_13 = arith.constant 0 : index
    %28 = vector.load %arg2[%c0_12, %c0_13] : memref<128x128xf32, #tpu.memory_space<vmem>>, vector<128x128xf32>
    %cst_14 = arith.constant dense<0.000000e+00> : vector<8x128xf32>
    %29 = tpu.matmul %27, %28, %cst_14 {dimension_numbers = #tpu.dot_dimension_numbers<[1], [0], [0], [1], [0, 0, 1, 1], [], []>} : vector<8x128xf32>, vector<128x128xf32>, vector<8x128xf32> -> vector<8x128xf32>
    %c2 = arith.constant 2 : index
    %c0_15 = arith.constant 0 : index
    %30 = vector.load %arg4[%c2, %c0_15] : memref<6x128xf32, #tpu.memory_space<vmem>>, vector<1x128xf32>
    %c3 = arith.constant 3 : index
    %c0_16 = arith.constant 0 : index
    %31 = vector.load %arg4[%c3, %c0_16] : memref<6x128xf32, #tpu.memory_space<vmem>>, vector<1x128xf32>
    %cst_17 = arith.constant dense<0.000000e+00> : vector<128xf32>
    %32 = vector.multi_reduction <add>, %29, %cst_17 [0] : vector<8x128xf32> to vector<128xf32>
    %33 = vector.shape_cast %32 : vector<128xf32> to vector<1x128xf32>
    %cst_18 = arith.constant 1.250000e-01 : f32
    %34 = vector.broadcast %cst_18 : f32 to vector<1x128xf32>
    %35 = arith.mulf %33, %34 : vector<1x128xf32>
    %36 = arith.mulf %29, %29 : vector<8x128xf32>
    %cst_19 = arith.constant dense<0.000000e+00> : vector<128xf32>
    %37 = vector.multi_reduction <add>, %36, %cst_19 [0] : vector<8x128xf32> to vector<128xf32>
    %38 = vector.shape_cast %37 : vector<128xf32> to vector<1x128xf32>
    %cst_20 = arith.constant 1.250000e-01 : f32
    %39 = vector.broadcast %cst_20 : f32 to vector<1x128xf32>
    %40 = arith.mulf %38, %39 : vector<1x128xf32>
    %41 = arith.mulf %35, %35 : vector<1x128xf32>
    %42 = arith.subf %40, %41 : vector<1x128xf32>
    %cst_21 = arith.constant 9.99999974E-6 : f32
    %43 = vector.broadcast %cst_21 : f32 to vector<1x128xf32>
    %44 = arith.addf %42, %43 : vector<1x128xf32>
    %45 = math.rsqrt %44 : vector<1x128xf32>
    %46 = arith.mulf %30, %45 : vector<1x128xf32>
    %47 = arith.mulf %35, %46 : vector<1x128xf32>
    %48 = arith.subf %31, %47 : vector<1x128xf32>
    %49 = vector.broadcast %46 : vector<1x128xf32> to vector<8x128xf32>
    %50 = arith.mulf %29, %49 : vector<8x128xf32>
    %51 = vector.broadcast %48 : vector<1x128xf32> to vector<8x128xf32>
    %52 = arith.addf %50, %51 : vector<8x128xf32>
    %cst_22 = arith.constant 0.000000e+00 : f32
    %53 = vector.broadcast %cst_22 : f32 to vector<8x128xf32>
    %54 = arith.maximumf %52, %53 : vector<8x128xf32>
    %c0_23 = arith.constant 0 : index
    %c0_24 = arith.constant 0 : index
    %55 = vector.load %arg3[%c0_23, %c0_24] : memref<128x128xf32, #tpu.memory_space<vmem>>, vector<128x128xf32>
    %cst_25 = arith.constant dense<0.000000e+00> : vector<8x128xf32>
    %56 = tpu.matmul %54, %55, %cst_25 {dimension_numbers = #tpu.dot_dimension_numbers<[1], [0], [0], [1], [0, 0, 1, 1], [], []>} : vector<8x128xf32>, vector<128x128xf32>, vector<8x128xf32> -> vector<8x128xf32>
    %c4 = arith.constant 4 : index
    %c0_26 = arith.constant 0 : index
    %57 = vector.load %arg4[%c4, %c0_26] : memref<6x128xf32, #tpu.memory_space<vmem>>, vector<1x128xf32>
    %c5 = arith.constant 5 : index
    %c0_27 = arith.constant 0 : index
    %58 = vector.load %arg4[%c5, %c0_27] : memref<6x128xf32, #tpu.memory_space<vmem>>, vector<1x128xf32>
    %cst_28 = arith.constant dense<0.000000e+00> : vector<128xf32>
    %59 = vector.multi_reduction <add>, %56, %cst_28 [0] : vector<8x128xf32> to vector<128xf32>
    %60 = vector.shape_cast %59 : vector<128xf32> to vector<1x128xf32>
    %cst_29 = arith.constant 1.250000e-01 : f32
    %61 = vector.broadcast %cst_29 : f32 to vector<1x128xf32>
    %62 = arith.mulf %60, %61 : vector<1x128xf32>
    %63 = arith.mulf %56, %56 : vector<8x128xf32>
    %cst_30 = arith.constant dense<0.000000e+00> : vector<128xf32>
    %64 = vector.multi_reduction <add>, %63, %cst_30 [0] : vector<8x128xf32> to vector<128xf32>
    %65 = vector.shape_cast %64 : vector<128xf32> to vector<1x128xf32>
    %cst_31 = arith.constant 1.250000e-01 : f32
    %66 = vector.broadcast %cst_31 : f32 to vector<1x128xf32>
    %67 = arith.mulf %65, %66 : vector<1x128xf32>
    %68 = arith.mulf %62, %62 : vector<1x128xf32>
    %69 = arith.subf %67, %68 : vector<1x128xf32>
    %cst_32 = arith.constant 9.99999974E-6 : f32
    %70 = vector.broadcast %cst_32 : f32 to vector<1x128xf32>
    %71 = arith.addf %69, %70 : vector<1x128xf32>
    %72 = math.rsqrt %71 : vector<1x128xf32>
    %73 = arith.mulf %57, %72 : vector<1x128xf32>
    %74 = arith.mulf %62, %73 : vector<1x128xf32>
    %75 = arith.subf %58, %74 : vector<1x128xf32>
    %76 = vector.broadcast %73 : vector<1x128xf32> to vector<8x128xf32>
    %77 = arith.mulf %56, %76 : vector<8x128xf32>
    %78 = vector.broadcast %75 : vector<1x128xf32> to vector<8x128xf32>
    %79 = arith.addf %77, %78 : vector<8x128xf32>
    %80 = arith.negf %79 : vector<8x128xf32>
    %81 = math.exp %80 : vector<8x128xf32>
    %cst_33 = arith.constant 1.000000e+00 : f32
    %82 = vector.broadcast %cst_33 : f32 to vector<8x128xf32>
    %83 = arith.addf %82, %81 : vector<8x128xf32>
    %84 = arith.divf %82, %83 : vector<8x128xf32>
    %85 = vector.extract_strided_slice %84 {offsets = [0, 0], sizes = [8, 1], strides = [1, 1]} : vector<8x128xf32> to vector<8x1xf32>
    %c0_34 = arith.constant 0 : index
    %c0_35 = arith.constant 0 : index
    %86 = vector.load %arg5[%c0_34, %c0_35] : memref<8x1xf32, #tpu.memory_space<vmem>>, vector<8x1xf32>
    tpu.vector_store %arg5[%c0_34, %c0_35], %85 {strides = array<i32>} : memref<8x1xf32, #tpu.memory_space<vmem>>, vector<8x1xf32>,
    return
  }
}

</mosaic_0001>

<llo_original>
// kernel: forward.1
$region0: #{forward.1}
  #allocation0 [shape = 'u32[]', space=smem, size = 0x4, offset = 0x4, fixed_abs, tag = 'smem constant byte address 0x4 - core index']
  #allocation1 [shape = 'u32[72,128]{1,0:T(1,128)}', space=vmem, size = 0x9000, scoped, tag = 'internal scratch']
  %s0 = inlined_call_operand.hbm [shape: f32[8,16], index: 0, kind: input, shape index: {}]
  %s1 = inlined_call_operand.hbm [shape: f32[16,128], index: 1, kind: input, shape index: {}]
  %s2 = inlined_call_operand.hbm [shape: f32[128,128], index: 2, kind: input, shape index: {}]
  %s3 = inlined_call_operand.hbm [shape: f32[128,128], index: 3, kind: input, shape index: {}]
  %s4 = inlined_call_operand.hbm [shape: f32[6,128], index: 4, kind: input, shape index: {}]
  %s5 = inlined_call_operand.vmem [shape: f32[8,1], index: 5, kind: output, shape index: {}]
  %s6 = sld [smem:[#allocation0]]
  $region50: #{forward.1} parent=0
    _
  %s8 = ssub.s32 1, %s6
  %s9 = scalar_select 0, %s8, %s6
  $region1: #{forward.1} parent=0
    #allocation2 [shape = 'u8[4096]{0}', space=vmem, size = 0x1000, scoped, tag = 'input window, operand 0, single buffered']
    #allocation3 [shape = 's32[1]{0}', space=sflag, size = 0x4, scoped, tag = 'scoped memory for forward.1']
    #allocation4 [shape = 'u8[8192]{0}', space=vmem, size = 0x2000, scoped, tag = 'input window, operand 1, single buffered']
    #allocation5 [shape = 's32[1]{0}', space=sflag, size = 0x4, scoped, tag = 'scoped memory for forward.1']
    #allocation6 [shape = 'u8[65536]{0}', space=vmem, size = 0x10000, scoped, tag = 'input window, operand 2, single buffered']
    #allocation7 [shape = 'u8[65536]{0}', space=vmem, size = 0x10000, scoped, tag = 'input window, operand 3, single buffered']
    #allocation8 [shape = 's32[1]{0}', space=sflag, size = 0x4, scoped, tag = 'scoped memory for forward.1']
    #allocation9 [shape = 'u8[4096]{0}', space=vmem, size = 0x1000, scoped, tag = 'input window, operand 4, single buffered']
    %10 = vsyncpa [#allocation3], 0
    %11 = vsyncpa [#allocation5], 0
    %12 = vsyncpa [#allocation8], 0
    // Predicated region
    $region2: #{forward.1} parent=1 // pred_check
      _
    $region3: #{forward.1} parent=1 // pred_check_branch
      %14 = sbr.rel (0) target = $region5
    $region4: #{forward.1} parent=1 // pred_region
      %16 = vsyncadd [#allocation3], 0
      %s18 = sshll.u32 %s0, 4
      %s19 = int_to_ptr.hbm [resolvable:$true] %s18
      %s20 = sshll.u32 [#allocation2], 4
      %s21 = int_to_ptr.vmem [resolvable:$true] %s20
      %23 = dma.hbm_to_vmem [thread:$0]  %s19, 128, %s21, [#allocation3]
    $region5: #{forward.1} parent=1 // pred_fallthru
      _
    // Predicated region
    $region6: #{forward.1} parent=1 // pred_check
      _
    $region7: #{forward.1} parent=1 // pred_check_branch
      %25 = sbr.rel (0) target = $region9
    $region8: #{forward.1} parent=1 // pred_region
      %27 = vsyncadd [#allocation5], 0
      %s28 = sshll.u32 %s1, 4
      %s29 = int_to_ptr.hbm [resolvable:$true] %s28
      %s30 = sshll.u32 [#allocation4], 4
      %s31 = int_to_ptr.vmem [resolvable:$true] %s30
      %36 = dma.hbm_to_vmem [thread:$0]  %s29, 256, %s31, [#allocation5], 128, 128, 8
    $region9: #{forward.1} parent=1 // pred_fallthru
      _
    // Predicated region
    $region10: #{forward.1} parent=1 // pred_check
      _
    $region11: #{forward.1} parent=1 // pred_check_branch
      %38 = sbr.rel (0) target = $region13
    $region12: #{forward.1} parent=1 // pred_region
      %40 = vsyncadd [#allocation5], 0
      %s41 = sshll.u32 %s2, 4
      %s42 = int_to_ptr.hbm [resolvable:$true] %s41
      %s43 = sshll.u32 [#allocation6], 4
      %s44 = int_to_ptr.vmem [resolvable:$true] %s43
      %49 = dma.hbm_to_vmem [thread:$0]  %s42, 2048, %s44, [#allocation5], 128, 128, 8
    $region13: #{forward.1} parent=1 // pred_fallthru
      _
    // Predicated region
    $region14: #{forward.1} parent=1 // pred_check
      _
    $region15: #{forward.1} parent=1 // pred_check_branch
      %51 = sbr.rel (0) target = $region17
    $region16: #{forward.1} parent=1 // pred_region
      %53 = vsyncadd [#allocation8], 0
      %s54 = sshll.u32 %s3, 4
      %s55 = int_to_ptr.hbm [resolvable:$true] %s54
      %s56 = sshll.u32 [#allocation7], 4
      %s57 = int_to_ptr.vmem [resolvable:$true] %s56
      %62 = dma.hbm_to_vmem [thread:$0]  %s55, 2048, %s57, [#allocation8], 128, 128, 8
    $region17: #{forward.1} parent=1 // pred_fallthru
      _
    // Predicated region
    $region18: #{forward.1} parent=1 // pred_check
      _
    $region19: #{forward.1} parent=1 // pred_check_branch
      %64 = sbr.rel (0) target = $region21
    $region20: #{forward.1} parent=1 // pred_region
      %66 = vsyncadd [#allocation8], 0
      %s68 = sshll.u32 %s4, 4
      %s69 = int_to_ptr.hbm [resolvable:$true] %s68
      %s70 = sshll.u32 [#allocation9], 4
      %s71 = int_to_ptr.vmem [resolvable:$true] %s70
      %73 = dma.hbm_to_vmem [thread:$0]  %s69, 128, %s71, [#allocation8]
    $region21: #{forward.1} parent=1 // pred_fallthru
      _
    // Predicated region
    $region22: #{forward.1} parent=1 // pred_check
      _
    $region23: #{forward.1} parent=1 // pred_check_branch
      %75 = sbr.rel (0) target = $region25
    $region24: #{forward.1} parent=1 // pred_region
      %77 = dma.done [#allocation3], 128
    $region25: #{forward.1} parent=1 // pred_fallthru
      _
    // Predicated region
    $region26: #{forward.1} parent=1 // pred_check
      _
    $region27: #{forward.1} parent=1 // pred_check_branch
      %79 = sbr.rel (0) target = $region29
    $region28: #{forward.1} parent=1 // pred_region
      %81 = dma.done [#allocation5], 256
    $region29: #{forward.1} parent=1 // pred_fallthru
      _
    // Predicated region
    $region30: #{forward.1} parent=1 // pred_check
      _
    $region31: #{forward.1} parent=1 // pred_check_branch
      %83 = sbr.rel (0) target = $region33
    $region32: #{forward.1} parent=1 // pred_region
      %85 = dma.done [#allocation5], 2048
    $region33: #{forward.1} parent=1 // pred_fallthru
      _
    // Predicated region
    $region34: #{forward.1} parent=1 // pred_check
      _
    $region35: #{forward.1} parent=1 // pred_check_branch
      %87 = sbr.rel (0) target = $region37
    $region36: #{forward.1} parent=1 // pred_region
      %89 = dma.done [#allocation8], 2048
    $region37: #{forward.1} parent=1 // pred_fallthru
      _
    // Predicated region
    $region38: #{forward.1} parent=1 // pred_check
      _
    $region39: #{forward.1} parent=1 // pred_check_branch
      %91 = sbr.rel (0) target = $region41
    $region40: #{forward.1} parent=1 // pred_region
      %93 = dma.done [#allocation8], 128
    $region41: #{forward.1} parent=1 // pred_fallthru
      _
    %v94 = vld [vmem:[#allocation2] sm:$0xff]
    %v95 = vld [vmem:[#allocation4] sm:$0xff]
    %v96 = vld [vmem:[#allocation4 + $0x8] sm:$0xff]
    %vm97 = vcmask 130048
    %v99 = vsel %vm97, %v94, 0
    %101 = vmatpush.msra.mxu0 0.0
    %102 = vmatpush.msra.mxu0 0.0
    %103 = vmatpush.msra.mxu0 0.0
    %104 = vmatpush.msra.mxu0 0.0
    %105 = vmatpush.msra.mxu0 0.0
    %106 = vmatpush.msra.mxu0 0.0
    %107 = vmatpush.msra.mxu0 0.0
    %108 = vmatpush.msra.mxu0 0.0
    %109 = vmatpush.msra.mxu0 0.0
    %110 = vmatpush.msra.mxu0 0.0
    %111 = vmatpush.msra.mxu0 0.0
    %112 = vmatpush.msra.mxu0 0.0
    %113 = vmatpush.msra.mxu0 0.0
    %114 = vmatpush.msra.mxu0 0.0
    %115 = vmatpush.msra.mxu0 %v96
    %116 = vmatpush.msra.mxu0 %v95
    %117 = vmatmul.f32.gmra.mxu0 %v99
    %v118 = vpop.f32.mrf.mxu0
    %v119 = vadd.f32 0.0, %v118
    %120 = vdwg.mxu0
    %v121 = vld [vmem:[#allocation9] sm:$0x1]
    %v122 = vld [vmem:[#allocation9 + $0x1] sm:$0x1]
    %v123 = vrot.slane %v119, 4
    %v124 = vadd.f32 %v119, %v123
    %v125 = vrot.slane %v124, 2
    %v126 = vadd.f32 %v124, %v125
    %v127 = vrot.slane %v126, 1
    %v128 = vadd.f32 %v126, %v127
    %v129 = vmul.f32 %v128, 0.125
    %v130 = vmul.f32 %v119, %v119
    %v131 = vrot.slane %v130, 4
    %v132 = vadd.f32 %v130, %v131
    %v133 = vrot.slane %v132, 2
    %v134 = vadd.f32 %v132, %v133
    %v135 = vrot.slane %v134, 1
    %v136 = vadd.f32 %v134, %v135
    %v137 = vmul.f32 %v136, 0.125
    %v138 = vmul.f32 %v129, %v129
    %v139 = vsub.f32 %v137, %v138
    %v140 = vadd.f32 %v139, 1e-05
    %v141 = vrsqrt.pop %v140
    %v142 = vmul.f32 %v141, %v140
    %v143 = vmul.f32 %v142, %v141
    %v144 = vmul.f32 0.5, %v143
    %v145 = vsub.f32 1.5, %v144
    %v146 = vmul.f32 %v141, %v145
    %vm147 = vweird.f32 %v140
    %vm148 = vweird.f32 %v141
    %vm149 = vmor %vm147, %vm148
    %v150 = vsel %vm149, %v141, %v146
    %v151 = vmul.f32 %v121, %v150
    %v152 = vmul.f32 %v129, %v151
    %v153 = vsub.f32 %v122, %v152
    %v154 = vperm.slane %v151, 0
    %v155 = vmul.f32 %v119, %v154
    %v156 = vperm.slane %v153, 0
    %v157 = vadd.f32 %v155, %v156
    %v158 = vmax.f32 %v157, 0.0
    %v159 = vld [vmem:[#allocation6] sm:$0xff]
    %v160 = vld [vmem:[#allocation6 + $0x8] sm:$0xff]
    %v161 = vld [vmem:[#allocation6 + $0x10] sm:$0xff]
    %v162 = vld [vmem:[#allocation6 + $0x18] sm:$0xff]
    %v163 = vld [vmem:[#allocation6 + $0x20] sm:$0xff]
    %v164 = vld [vmem:[#allocation6 + $0x28] sm:$0xff]
    %v165 = vld [vmem:[#allocation6 + $0x30] sm:$0xff]
    %v166 = vld [vmem:[#allocation6 + $0x38] sm:$0xff]
    %v167 = vld [vmem:[#allocation6 + $0x40] sm:$0xff]
    %v168 = vld [vmem:[#allocation6 + $0x48] sm:$0xff]
    %v169 = vld [vmem:[#allocation6 + $0x50] sm:$0xff]
    %v170 = vld [vmem:[#allocation6 + $0x58] sm:$0xff]
    %v171 = vld [vmem:[#allocation6 + $0x60] sm:$0xff]
    %v172 = vld [vmem:[#allocation6 + $0x68] sm:$0xff]
    %v173 = vld [vmem:[#allocation6 + $0x70] sm:$0xff]
    %v174 = vld [vmem:[#allocation6 + $0x78] sm:$0xff]
    %175 = vmatpush.msra.mxu0 %v174
    %176 = vmatpush.msra.mxu0 %v173
    %177 = vmatpush.msra.mxu0 %v172
    %178 = vmatpush.msra.mxu0 %v171
    %179 = vmatpush.msra.mxu0 %v170
    %180 = vmatpush.msra.mxu0 %v169
    %181 = vmatpush.msra.mxu0 %v168
    %182 = vmatpush.msra.mxu0 %v167
    %183 = vmatpush.msra.mxu0 %v166
    %184 = vmatpush.msra.mxu0 %v165
    %185 = vmatpush.msra.mxu0 %v164
    %186 = vmatpush.msra.mxu0 %v163
    %187 = vmatpush.msra.mxu0 %v162
    %188 = vmatpush.msra.mxu0 %v161
    %189 = vmatpush.msra.mxu0 %v160
    %190 = vmatpush.msra.mxu0 %v159
    %191 = vmatmul.f32.gmra.mxu0 %v158
    %v192 = vpop.f32.mrf.mxu0
    %v193 = vadd.f32 0.0, %v192
    %194 = vdwg.mxu0
    %v195 = vld [vmem:[#allocation9 + $0x2] sm:$0x1]
    %v196 = vld [vmem:[#allocation9 + $0x3] sm:$0x1]
    %v197 = vrot.slane %v193, 4
    %v198 = vadd.f32 %v193, %v197
    %v199 = vrot.slane %v198, 2
    %v200 = vadd.f32 %v198, %v199
    %v201 = vrot.slane %v200, 1
    %v202 = vadd.f32 %v200, %v201
    %v203 = vmul.f32 %v202, 0.125
    %v204 = vmul.f32 %v193, %v193
    %v205 = vrot.slane %v204, 4
    %v206 = vadd.f32 %v204, %v205
    %v207 = vrot.slane %v206, 2
    %v208 = vadd.f32 %v206, %v207
    %v209 = vrot.slane %v208, 1
    %v210 = vadd.f32 %v208, %v209
    %v211 = vmul.f32 %v210, 0.125
    %v212 = vmul.f32 %v203, %v203
    %v213 = vsub.f32 %v211, %v212
    %v214 = vadd.f32 %v213, 1e-05
    %v215 = vrsqrt.pop %v214
    %v216 = vmul.f32 %v215, %v214
    %v217 = vmul.f32 %v216, %v215
    %v218 = vmul.f32 0.5, %v217
    %v219 = vsub.f32 1.5, %v218
    %v220 = vmul.f32 %v215, %v219
    %vm221 = vweird.f32 %v214
    %vm222 = vweird.f32 %v215
    %vm223 = vmor %vm221, %vm222
    %v224 = vsel %vm223, %v215, %v220
    %v225 = vmul.f32 %v195, %v224
    %v226 = vmul.f32 %v203, %v225
    %v227 = vsub.f32 %v196, %v226
    %v228 = vperm.slane %v225, 0
    %v229 = vmul.f32 %v193, %v228
    %v230 = vperm.slane %v227, 0
    %v231 = vadd.f32 %v229, %v230
    %v232 = vmax.f32 %v231, 0.0
    %v233 = vld [vmem:[#allocation7] sm:$0xff]
    %v234 = vld [vmem:[#allocation7 + $0x8] sm:$0xff]
    %v235 = vld [vmem:[#allocation7 + $0x10] sm:$0xff]
    %v236 = vld [vmem:[#allocation7 + $0x18] sm:$0xff]
    %v237 = vld [vmem:[#allocation7 + $0x20] sm:$0xff]
    %v238 = vld [vmem:[#allocation7 + $0x28] sm:$0xff]
    %v239 = vld [vmem:[#allocation7 + $0x30] sm:$0xff]
    %v240 = vld [vmem:[#allocation7 + $0x38] sm:$0xff]
    %v241 = vld [vmem:[#allocation7 + $0x40] sm:$0xff]
    %v242 = vld [vmem:[#allocation7 + $0x48] sm:$0xff]
    %v243 = vld [vmem:[#allocation7 + $0x50] sm:$0xff]
    %v244 = vld [vmem:[#allocation7 + $0x58] sm:$0xff]
    %v245 = vld [vmem:[#allocation7 + $0x60] sm:$0xff]
    %v246 = vld [vmem:[#allocation7 + $0x68] sm:$0xff]
    %v247 = vld [vmem:[#allocation7 + $0x70] sm:$0xff]
    %v248 = vld [vmem:[#allocation7 + $0x78] sm:$0xff]
    %249 = vmatpush.msra.mxu0 %v248
    %250 = vmatpush.msra.mxu0 %v247
    %251 = vmatpush.msra.mxu0 %v246
    %252 = vmatpush.msra.mxu0 %v245
    %253 = vmatpush.msra.mxu0 %v244
    %254 = vmatpush.msra.mxu0 %v243
    %255 = vmatpush.msra.mxu0 %v242
    %256 = vmatpush.msra.mxu0 %v241
    %257 = vmatpush.msra.mxu0 %v240
    %258 = vmatpush.msra.mxu0 %v239
    %259 = vmatpush.msra.mxu0 %v238
    %260 = vmatpush.msra.mxu0 %v237
    %261 = vmatpush.msra.mxu0 %v236
    %262 = vmatpush.msra.mxu0 %v235
    %263 = vmatpush.msra.mxu0 %v234
    %264 = vmatpush.msra.mxu0 %v233
    %265 = vmatmul.f32.gmra.mxu0 %v232
    %v266 = vpop.f32.mrf.mxu0
    %v267 = vadd.f32 0.0, %v266
    %268 = vdwg.mxu0
    %v269 = vld [vmem:[#allocation9 + $0x4] sm:$0x1]
    %v270 = vld [vmem:[#allocation9 + $0x5] sm:$0x1]
    %v271 = vrot.slane %v267, 4
    %v272 = vadd.f32 %v267, %v271
    %v273 = vrot.slane %v272, 2
    %v274 = vadd.f32 %v272, %v273
    %v275 = vrot.slane %v274, 1
    %v276 = vadd.f32 %v274, %v275
    %v277 = vmul.f32 %v276, 0.125
    %v278 = vmul.f32 %v267, %v267
    %v279 = vrot.slane %v278, 4
    %v280 = vadd.f32 %v278, %v279
    %v281 = vrot.slane %v280, 2
    %v282 = vadd.f32 %v280, %v281
    %v283 = vrot.slane %v282, 1
    %v284 = vadd.f32 %v282, %v283
    %v285 = vmul.f32 %v284, 0.125
    %v286 = vmul.f32 %v277, %v277
    %v287 = vsub.f32 %v285, %v286
    %v288 = vadd.f32 %v287, 1e-05
    %v289 = vrsqrt.pop %v288
    %v290 = vmul.f32 %v289, %v288
    %v291 = vmul.f32 %v290, %v289
    %v292 = vmul.f32 0.5, %v291
    %v293 = vsub.f32 1.5, %v292
    %v294 = vmul.f32 %v289, %v293
    %vm295 = vweird.f32 %v288
    %vm296 = vweird.f32 %v289
    %vm297 = vmor %vm295, %vm296
    %v298 = vsel %vm297, %v289, %v294
    %v299 = vmul.f32 %v269, %v298
    %v300 = vmul.f32 %v277, %v299
    %v301 = vsub.f32 %v270, %v300
    %v302 = vperm.slane %v299, 0
    %v303 = vmul.f32 %v267, %v302
    %v304 = vperm.slane %v301, 0
    %v305 = vadd.f32 %v303, %v304
    %v306 = vxor.u32 %v305, 2147483648
    %v307 = vmul.f32 %v306, 1.442695
    %v308 = vpow.pop %v307
    %v309 = vadd.f32 %v308, 1.0
    %v310 = vrcp.pop %v309
    %v311 = vmul.f32 %v309, %v310
    %v312 = vsub.f32 1.0, %v311
    %v313 = vmul.f32 %v310, %v312
    %v314 = vadd.f32 %v310, %v313
    %vm315 = vweird.f32 %v309
    %vm316 = vweird.f32 %v310
    %vm317 = vmor %vm315, %vm316
    %v318 = vsel %vm317, %v310, %v314
    %v319 = vand.u32 2147483647, %v309
    %vm320 = vcmp.eq.f32.partialorder %v319, 8.507059e+37
    %v321 = vand.u32 %v309, 2147483648
    %v322 = vor.u32 1.1754944e-38, %v321
    %v323 = vsel %vm320, %v322, %v318
    %v324 = vmul.f32 1.0, %v323
    %vm325 = vcmask 7168
    %326 = vst.msk [vmem:[%s5] sm:$0xff] %vm325, %v324
    // Predicated region
    $region42: #{forward.1} parent=1 // pred_check
      _
    $region43: #{forward.1} parent=1 // pred_check_branch
      %328 = sbr.rel (0) target = $region45
    $region44: #{forward.1} parent=1 // pred_region
      _
    $region45: #{forward.1} parent=1 // pred_fallthru
      _
    // Predicated region
    $region46: #{forward.1} parent=1 // pred_check
      _
    $region47: #{forward.1} parent=1 // pred_check_branch
      %330 = sbr.rel (0) target = $region49
    $region48: #{forward.1} parent=1 // pred_region
      _
    $region49: #{forward.1} parent=1 // pred_fallthru
      _
    %331 = vsyncpa [#allocation3], 1
    %332 = vsyncpa [#allocation5], 1
    %333 = vsyncpa [#allocation8], 1

</llo_original>
